<compile_context>
chip_gen: v7x
topology: tpu7x:2x2x1
jax: 0.10.0
libtpu: 0.0.40
codegen_flags: <defaults>
</compile_context>

<pallas_src>
import numpy as np
import jax
import jax.numpy as jnp
from jax import lax
from jax.experimental import pallas as pl
from jax.experimental.pallas import tpu as pltpu

# --------------------------------------------------------------------------
# Scaled-down synthetic "encodec_24khz" configuration
# (real model: bins=1024, dim=128, hop=320, n_q up to 16).
BANDWIDTHS = [1.5, 3.0, 6.0, 12.0]
N_Q_FOR_BANDWIDTH = [1, 2, 3, 4]     # quantizers used per target bandwidth
NQ_MAX = max(N_Q_FOR_BANDWIDTH)      # codebook_weights holds all NQ_MAX codebooks
BINS = 64                            # codebook entries per quantizer
DIM = 32                             # codebook / embedding dimension
FRAME = 16                           # encoder hop (kernel == stride)


# --------------------------------------------------------------------------
# Fused kernel: synthetic encoder + residual-VQ + embedding-sum.
#   frames_ref : (rows, FRAME)     f32  chunk of flattened audio frames (rows ⊂ B*T)
#   wenc_ref   : (FRAME, DIM)      f32  encoder projection
#   benc_ref   : (1, DIM)          f32  encoder bias
#   cb_ref     : (n_q, BINS, DIM)  f32  codebooks used for this bandwidth
#   cnh_ref    : (n_q, BINS)       f32  0.5*||codebook||^2, precomputed in wrapper
#   o_ref      : (rows, DIM)       f32  sum_q dequantized embeddings (lane-dense)
def fused_features_kernel(frames_ref, wenc_ref, benc_ref, cb_ref, cnh_ref, o_ref):
    n_q = cb_ref.shape[0]

    x = frames_ref[...]                                              # (rows, FRAME)
    emb = jnp.dot(x, wenc_ref[...],
                  preferred_element_type=jnp.float32) + benc_ref[...]  # (rows, DIM)
    residual = emb
    feat = jnp.zeros_like(emb)

    # n_q <= 4 here, so a static unroll keeps live ranges tiny.
    # TODO(synk): switch to lax.fori_loop with dynamic cb_ref[q] if n_q scales to 16.
    for q in range(n_q):
        cbq = cb_ref[q]                                              # (BINS, DIM)
        # argmin_k ||r - c_k||^2 == argmin_k (0.5*||c_k||^2 - <c_k, r>)
        # BINS sits on the lane axis -> dense MXU result tiles.
        dots = lax.dot_general(residual, cbq, (((1,), (1,)), ((), ())),
                               preferred_element_type=jnp.float32)   # (rows, BINS)
        d = cnh_ref[pl.ds(q, 1), :] - dots                           # (rows, BINS)
        mind = jnp.min(d, axis=-1, keepdims=True)                    # (rows, 1)
        onehot = (d <= mind).astype(jnp.float32)                     # (rows, BINS)
        quant = jnp.dot(onehot, cbq,
                        preferred_element_type=jnp.float32)          # (rows, DIM)
        residual = residual - quant
        # With train_codebooks=False (module default) codebook_weights is a frozen
        # copy of the quantizer codebooks, so F.embedding(codes)+sum == sum of quants.
        feat = feat + quant

    o_ref[...] = feat


# --------------------------------------------------------------------------
def encodec_features_forward(audio, params, bandwidth_id):
    """EncodecFeatures.forward: audio (B, L) f32 -> features (B, DIM, T) f32."""
    w_enc, b_enc, codebooks, codebook_weights = params
    del codebook_weights   # frozen copy of `codebooks`; lookup fused with dequant
    n_q = N_Q_FOR_BANDWIDTH[bandwidth_id]          # set_target_bandwidth(...)
    B, L = audio.shape
    T = L // FRAME
    N = B * T
    frames = audio.reshape(N, FRAME)               # kernel==stride framing, flat batch
    cb_used = codebooks[:n_q]
    cn_half = 0.5 * jnp.sum(cb_used * cb_used, axis=-1)   # (n_q, BINS), hoisted

    # Two sublane-aligned row chunks so v7x's 2 TensorCores both get work; on
    # v5e/v6e the "parallel" axis just runs as a 2-step loop (negligible here).
    rows = N // 2 if (N % 16 == 0) else N
    n_steps = N // rows

    feat_flat = pl.pallas_call(
        fused_features_kernel,
        out_shape=jax.ShapeDtypeStruct((N, DIM), jnp.float32),
        grid=(n_steps,),
        in_specs=[
            pl.BlockSpec((rows, FRAME), lambda i: (i, 0)),
            pl.BlockSpec((FRAME, DIM), lambda i: (0, 0)),
            pl.BlockSpec((1, DIM), lambda i: (0, 0)),
            pl.BlockSpec((n_q, BINS, DIM), lambda i: (0, 0, 0)),
            pl.BlockSpec((n_q, BINS), lambda i: (0, 0)),
        ],
        out_specs=pl.BlockSpec((rows, DIM), lambda i: (i, 0)),
        compiler_params=pltpu.CompilerParams(
            dimension_semantics=("parallel",)),
        # NOTE: at real EnCodec sizes (BINS=1024, DIM=128, n_q=16) set
        # vmem_limit_bytes explicitly and single-buffer the codebooks via a
        # scratch VMEM copy to stay inside v7x's 64 MiB VMEM.
    )(frames, w_enc, b_enc.reshape(1, DIM), cb_used, cn_half)

    # Lane-dense kernel output (rows, DIM); (B, C, L) transpose is cheap
    # wrapper-side layout plumbing handled by XLA.
    return jnp.transpose(feat_flat.reshape(B, T, DIM), (0, 2, 1))


# --------------------------------------------------------------------------
# Pure-JAX reference with identical semantics (for correctness check).
def reference_forward(audio, params, bandwidth_id):
    w_enc, b_enc, codebooks, codebook_weights = params
    n_q = N_Q_FOR_BANDWIDTH[bandwidth_id]
    B, L = audio.shape
    T = L // FRAME
    frames = audio.reshape(B, T, FRAME)
    emb = frames @ w_enc + b_enc                                 # (B, T, D)
    residual = emb
    codes = []
    for q in range(n_q):
        cbq = codebooks[q]                                       # (BINS, D)
        d = jnp.sum((residual[:, :, None, :] - cbq[None, None]) ** 2, axis=-1)
        idx = jnp.argmin(d, axis=-1)                             # (B, T)
        codes.append(idx.astype(jnp.int32))
        residual = residual - cbq[idx]
    codes = jnp.stack(codes, axis=0)                             # (n_q, B, T)
    offsets = (jnp.arange(n_q, dtype=jnp.int32) * BINS)[:, None, None]
    eidx = codes + offsets
    feats = codebook_weights[eidx].sum(axis=0)                   # (B, T, D)
    return jnp.transpose(feats, (0, 2, 1))                       # (B, D, T)


def init_params(key):
    k_w, k_b, k_cb = jax.random.split(key, 3)
    w_enc = jax.random.normal(k_w, (FRAME, DIM), jnp.float32) / np.sqrt(FRAME)
    b_enc = 0.01 * jax.random.normal(k_b, (DIM,), jnp.float32)
    codebooks = jax.random.normal(k_cb, (NQ_MAX, BINS, DIM), jnp.float32)
    # mirrors torch.cat([vq.codebook for vq in layers[:num_q]], dim=0)
    codebook_weights = codebooks.reshape(NQ_MAX * BINS, DIM)
    return w_enc, b_enc, codebooks, codebook_weights


if __name__ == "__main__":
    key = jax.random.PRNGKey(0)
    k_audio, k_params = jax.random.split(key)

    B, L = 2, 128                                   # -> T = 8 frames, B*T = 16 rows
    audio = jax.random.normal(k_audio, (B, L), jnp.float32)
    params = init_params(k_params)
    bandwidth_id = 3                                # bandwidth 12.0 -> 4 quantizers

    feats = encodec_features_forward(audio, params, bandwidth_id)
    feats = jax.block_until_ready(feats)
    assert feats.shape == (B, DIM, L // FRAME), feats.shape

    ref = reference_forward(audio, params, bandwidth_id)
    np.testing.assert_allclose(np.asarray(feats), np.asarray(ref),
                               rtol=1e-3, atol=1e-3)
    print("KERNEL_OK")
</pallas_src>

<mosaic_0001>
module attributes {stable_mosaic.version = 11 : i64} {
  func.func @fused_features_kernel(%arg0: i32, %arg1: memref<8x16xf32, #tpu.memory_space<vmem>>, %arg2: memref<16x32xf32, #tpu.memory_space<vmem>>, %arg3: memref<1x32xf32, #tpu.memory_space<vmem>>, %arg4: memref<4x64x32xf32, #tpu.memory_space<vmem>>, %arg5: memref<4x64xf32, #tpu.memory_space<vmem>>, %arg6: memref<8x32xf32, #tpu.memory_space<vmem>>) attributes {dimension_semantics = [#tpu.dimension_semantics<parallel>], iteration_bounds = array<i64: 2>, scalar_prefetch = 0 : i64, scratch_operands = 0 : i64, tpu.core_type = #tpu.core_type<tc>, window_params = [{transform_indices = @transform_0, window_bounds = array<i64: 8, 16>}, {pipeline_mode = #tpu.pipeline_mode<synchronous>, transform_indices = @transform_1, window_bounds = array<i64: 16, 32>}, {pipeline_mode = #tpu.pipeline_mode<synchronous>, transform_indices = @transform_2, window_bounds = array<i64: 1, 32>}, {pipeline_mode = #tpu.pipeline_mode<synchronous>, transform_indices = @transform_3, window_bounds = array<i64: 4, 64, 32>}, {pipeline_mode = #tpu.pipeline_mode<synchronous>, transform_indices = @transform_4, window_bounds = array<i64: 4, 64>}, {transform_indices = @transform_5, window_bounds = array<i64: 8, 32>}]} {
    %c0 = arith.constant 0 : index
    %c0_0 = arith.constant 0 : index
    %0 = vector.load %arg1[%c0, %c0_0] : memref<8x16xf32, #tpu.memory_space<vmem>>, vector<8x16xf32>
    %c0_1 = arith.constant 0 : index
    %c0_2 = arith.constant 0 : index
    %1 = vector.load %arg2[%c0_1, %c0_2] : memref<16x32xf32, #tpu.memory_space<vmem>>, vector<16x32xf32>
    %cst = arith.constant dense<0.000000e+00> : vector<8x32xf32>
    %2 = tpu.matmul %0, %1, %cst {dimension_numbers = #tpu.dot_dimension_numbers<[1], [0], [0], [1], [0, 0, 1, 1], [], []>} : vector<8x16xf32>, vector<16x32xf32>, vector<8x32xf32> -> vector<8x32xf32>
    %c0_3 = arith.constant 0 : index
    %c0_4 = arith.constant 0 : index
    %3 = vector.load %arg3[%c0_3, %c0_4] : memref<1x32xf32, #tpu.memory_space<vmem>>, vector<1x32xf32>
    %4 = vector.broadcast %3 : vector<1x32xf32> to vector<8x32xf32>
    %5 = arith.addf %2, %4 : vector<8x32xf32>
    %cst_5 = arith.constant 0.000000e+00 : f32
    %6 = vector.broadcast %cst_5 : f32 to vector<8x32xf32>
    %c0_6 = arith.constant 0 : index
    %c0_7 = arith.constant 0 : index
    %c0_8 = arith.constant 0 : index
    %7 = vector.load %arg4[%c0_6, %c0_7, %c0_8] : memref<4x64x32xf32, #tpu.memory_space<vmem>>, vector<1x64x32xf32>
    %8 = vector.shape_cast %7 : vector<1x64x32xf32> to vector<64x32xf32>
    %cst_9 = arith.constant dense<0.000000e+00> : vector<8x64xf32>
    %9 = tpu.matmul %5, %8, %cst_9 {dimension_numbers = #tpu.dot_dimension_numbers<[1], [1], [0], [0], [0, 0, 1, 0], [], []>} : vector<8x32xf32>, vector<64x32xf32>, vector<8x64xf32> -> vector<8x64xf32>
    %c0_10 = arith.constant 0 : index
    %c0_11 = arith.constant 0 : index
    %10 = vector.load %arg5[%c0_10, %c0_11] : memref<4x64xf32, #tpu.memory_space<vmem>>, vector<1x64xf32>
    %11 = vector.broadcast %10 : vector<1x64xf32> to vector<8x64xf32>
    %12 = arith.subf %11, %9 : vector<8x64xf32>
    %cst_12 = arith.constant dense<0x7F800000> : vector<8xf32>
    %13 = vector.multi_reduction <minimumf>, %12, %cst_12 [1] : vector<8x64xf32> to vector<8xf32>
    %14 = vector.shape_cast %13 : vector<8xf32> to vector<8x1xf32>
    %15 = vector.broadcast %14 : vector<8x1xf32> to vector<8x64xf32>
    %16 = arith.cmpf ole, %12, %15 : vector<8x64xf32>
    %17 = arith.extui %16 : vector<8x64xi1> to vector<8x64xi32>
    %18 = arith.sitofp %17 : vector<8x64xi32> to vector<8x64xf32>
    %cst_13 = arith.constant dense<0.000000e+00> : vector<8x32xf32>
    %19 = tpu.matmul %18, %8, %cst_13 {dimension_numbers = #tpu.dot_dimension_numbers<[1], [0], [0], [1], [0, 0, 1, 1], [], []>} : vector<8x64xf32>, vector<64x32xf32>, vector<8x32xf32> -> vector<8x32xf32>
    %20 = arith.subf %5, %19 : vector<8x32xf32>
    %21 = arith.addf %6, %19 : vector<8x32xf32>
    %c1 = arith.constant 1 : index
    %c0_14 = arith.constant 0 : index
    %c0_15 = arith.constant 0 : index
    %22 = vector.load %arg4[%c1, %c0_14, %c0_15] : memref<4x64x32xf32, #tpu.memory_space<vmem>>, vector<1x64x32xf32>
    %23 = vector.shape_cast %22 : vector<1x64x32xf32> to vector<64x32xf32>
    %cst_16 = arith.constant dense<0.000000e+00> : vector<8x64xf32>
    %24 = tpu.matmul %20, %23, %cst_16 {dimension_numbers = #tpu.dot_dimension_numbers<[1], [1], [0], [0], [0, 0, 1, 0], [], []>} : vector<8x32xf32>, vector<64x32xf32>, vector<8x64xf32> -> vector<8x64xf32>
    %c1_17 = arith.constant 1 : index
    %c0_18 = arith.constant 0 : index
    %25 = vector.load %arg5[%c1_17, %c0_18] : memref<4x64xf32, #tpu.memory_space<vmem>>, vector<1x64xf32>
    %26 = vector.broadcast %25 : vector<1x64xf32> to vector<8x64xf32>
    %27 = arith.subf %26, %24 : vector<8x64xf32>
    %cst_19 = arith.constant dense<0x7F800000> : vector<8xf32>
    %28 = vector.multi_reduction <minimumf>, %27, %cst_19 [1] : vector<8x64xf32> to vector<8xf32>
    %29 = vector.shape_cast %28 : vector<8xf32> to vector<8x1xf32>
    %30 = vector.broadcast %29 : vector<8x1xf32> to vector<8x64xf32>
    %31 = arith.cmpf ole, %27, %30 : vector<8x64xf32>
    %32 = arith.extui %31 : vector<8x64xi1> to vector<8x64xi32>
    %33 = arith.sitofp %32 : vector<8x64xi32> to vector<8x64xf32>
    %cst_20 = arith.constant dense<0.000000e+00> : vector<8x32xf32>
    %34 = tpu.matmul %33, %23, %cst_20 {dimension_numbers = #tpu.dot_dimension_numbers<[1], [0], [0], [1], [0, 0, 1, 1], [], []>} : vector<8x64xf32>, vector<64x32xf32>, vector<8x32xf32> -> vector<8x32xf32>
    %35 = arith.subf %20, %34 : vector<8x32xf32>
    %36 = arith.addf %21, %34 : vector<8x32xf32>
    %c2 = arith.constant 2 : index
    %c0_21 = arith.constant 0 : index
    %c0_22 = arith.constant 0 : index
    %37 = vector.load %arg4[%c2, %c0_21, %c0_22] : memref<4x64x32xf32, #tpu.memory_space<vmem>>, vector<1x64x32xf32>
    %38 = vector.shape_cast %37 : vector<1x64x32xf32> to vector<64x32xf32>
    %cst_23 = arith.constant dense<0.000000e+00> : vector<8x64xf32>
    %39 = tpu.matmul %35, %38, %cst_23 {dimension_numbers = #tpu.dot_dimension_numbers<[1], [1], [0], [0], [0, 0, 1, 0], [], []>} : vector<8x32xf32>, vector<64x32xf32>, vector<8x64xf32> -> vector<8x64xf32>
    %c2_24 = arith.constant 2 : index
    %c0_25 = arith.constant 0 : index
    %40 = vector.load %arg5[%c2_24, %c0_25] : memref<4x64xf32, #tpu.memory_space<vmem>>, vector<1x64xf32>
    %41 = vector.broadcast %40 : vector<1x64xf32> to vector<8x64xf32>
    %42 = arith.subf %41, %39 : vector<8x64xf32>
    %cst_26 = arith.constant dense<0x7F800000> : vector<8xf32>
    %43 = vector.multi_reduction <minimumf>, %42, %cst_26 [1] : vector<8x64xf32> to vector<8xf32>
    %44 = vector.shape_cast %43 : vector<8xf32> to vector<8x1xf32>
    %45 = vector.broadcast %44 : vector<8x1xf32> to vector<8x64xf32>
    %46 = arith.cmpf ole, %42, %45 : vector<8x64xf32>
    %47 = arith.extui %46 : vector<8x64xi1> to vector<8x64xi32>
    %48 = arith.sitofp %47 : vector<8x64xi32> to vector<8x64xf32>
    %cst_27 = arith.constant dense<0.000000e+00> : vector<8x32xf32>
    %49 = tpu.matmul %48, %38, %cst_27 {dimension_numbers = #tpu.dot_dimension_numbers<[1], [0], [0], [1], [0, 0, 1, 1], [], []>} : vector<8x64xf32>, vector<64x32xf32>, vector<8x32xf32> -> vector<8x32xf32>
    %50 = arith.subf %35, %49 : vector<8x32xf32>
    %51 = arith.addf %36, %49 : vector<8x32xf32>
    %c3 = arith.constant 3 : index
    %c0_28 = arith.constant 0 : index
    %c0_29 = arith.constant 0 : index
    %52 = vector.load %arg4[%c3, %c0_28, %c0_29] : memref<4x64x32xf32, #tpu.memory_space<vmem>>, vector<1x64x32xf32>
    %53 = vector.shape_cast %52 : vector<1x64x32xf32> to vector<64x32xf32>
    %cst_30 = arith.constant dense<0.000000e+00> : vector<8x64xf32>
    %54 = tpu.matmul %50, %53, %cst_30 {dimension_numbers = #tpu.dot_dimension_numbers<[1], [1], [0], [0], [0, 0, 1, 0], [], []>} : vector<8x32xf32>, vector<64x32xf32>, vector<8x64xf32> -> vector<8x64xf32>
    %c3_31 = arith.constant 3 : index
    %c0_32 = arith.constant 0 : index
    %55 = vector.load %arg5[%c3_31, %c0_32] : memref<4x64xf32, #tpu.memory_space<vmem>>, vector<1x64xf32>
    %56 = vector.broadcast %55 : vector<1x64xf32> to vector<8x64xf32>
    %57 = arith.subf %56, %54 : vector<8x64xf32>
    %cst_33 = arith.constant dense<0x7F800000> : vector<8xf32>
    %58 = vector.multi_reduction <minimumf>, %57, %cst_33 [1] : vector<8x64xf32> to vector<8xf32>
    %59 = vector.shape_cast %58 : vector<8xf32> to vector<8x1xf32>
    %60 = vector.broadcast %59 : vector<8x1xf32> to vector<8x64xf32>
    %61 = arith.cmpf ole, %57, %60 : vector<8x64xf32>
    %62 = arith.extui %61 : vector<8x64xi1> to vector<8x64xi32>
    %63 = arith.sitofp %62 : vector<8x64xi32> to vector<8x64xf32>
    %cst_34 = arith.constant dense<0.000000e+00> : vector<8x32xf32>
    %64 = tpu.matmul %63, %53, %cst_34 {dimension_numbers = #tpu.dot_dimension_numbers<[1], [0], [0], [1], [0, 0, 1, 1], [], []>} : vector<8x64xf32>, vector<64x32xf32>, vector<8x32xf32> -> vector<8x32xf32>
    %65 = arith.addf %51, %64 : vector<8x32xf32>
    %c0_35 = arith.constant 0 : index
    %c0_36 = arith.constant 0 : index
    %66 = vector.load %arg6[%c0_35, %c0_36] : memref<8x32xf32, #tpu.memory_space<vmem>>, vector<8x32xf32>
    tpu.vector_store %arg6[%c0_35, %c0_36], %65 {strides = array<i32>} : memref<8x32xf32, #tpu.memory_space<vmem>>, vector<8x32xf32>,
    return
  }
  func.func @transform_0(%arg0: i32) -> (i32, i32) {
    %c0_i32 = arith.constant 0 : i32
    %c0_i32_0 = arith.constant 0 : i32
    return %arg0, %c0_i32 : i32, i32
  }
  func.func @transform_1(%arg0: i32) -> (i32, i32) {
    %c0_i32 = arith.constant 0 : i32
    %c0_i32_0 = arith.constant 0 : i32
    %c0_i32_1 = arith.constant 0 : i32
    return %c0_i32, %c0_i32_0 : i32, i32
  }
  func.func @transform_2(%arg0: i32) -> (i32, i32) {
    %c0_i32 = arith.constant 0 : i32
    %c0_i32_0 = arith.constant 0 : i32
    %c0_i32_1 = arith.constant 0 : i32
    return %c0_i32, %c0_i32_0 : i32, i32
  }
  func.func @transform_3(%arg0: i32) -> (i32, i32, i32) {
    %c0_i32 = arith.constant 0 : i32
    %c0_i32_0 = arith.constant 0 : i32
    %c0_i32_1 = arith.constant 0 : i32
    %c0_i32_2 = arith.constant 0 : i32
    return %c0_i32, %c0_i32_0, %c0_i32_1 : i32, i32, i32
  }
  func.func @transform_4(%arg0: i32) -> (i32, i32) {
    %c0_i32 = arith.constant 0 : i32
    %c0_i32_0 = arith.constant 0 : i32
    %c0_i32_1 = arith.constant 0 : i32
    return %c0_i32, %c0_i32_0 : i32, i32
  }
  func.func @transform_5(%arg0: i32) -> (i32, i32) {
    %c0_i32 = arith.constant 0 : i32
    %c0_i32_0 = arith.constant 0 : i32
    return %arg0, %c0_i32 : i32, i32
  }
}

</mosaic_0001>

<llo_original>
// kernel: tpu_custom_call.1
$region0: #{tpu_custom_call.1}
  #allocation0 [shape = 'u32[]', space=smem, size = 0x4, offset = 0x4, fixed_abs, tag = 'smem constant byte address 0x4 - core index']
  #allocation1 [shape = 'u32[144,128]{1,0:T(1,128)}', space=vmem, size = 0x12000, scoped, tag = 'internal scratch']
  %s0 = inlined_call_operand.vmem [shape: f32[16,16], index: 0, kind: input, shape index: {}]
  %s1 = inlined_call_operand.vmem [shape: f32[16,32], index: 1, kind: input, shape index: {}]
  %s2 = inlined_call_operand.vmem [shape: f32[1,32], index: 2, kind: input, shape index: {}]
  %s3 = inlined_call_operand.vmem [shape: f32[4,64,32], index: 3, kind: input, shape index: {}]
  %s4 = inlined_call_operand.vmem [shape: f32[4,64], index: 4, kind: input, shape index: {}]
  %s5 = inlined_call_operand.hbm [shape: f32[16,32], index: 5, kind: output, shape index: {}]
  %s6 = sld [smem:[#allocation0]]
  $region53: #{tpu_custom_call.1} parent=0
    _
  %s8 = ssub.s32 1, %s6
  %s9 = scalar_select 0, %s8, %s6
  $region1: #{tpu_custom_call.1} parent=0
    #allocation2 [shape = 'u8[8192]{0}', space=vmem, size = 0x2000, scoped, tag = 'output window, operand 0']
    #allocation3 [shape = 's32[2]{0}', space=sflag, size = 0x8, scoped, tag = 'scoped memory for tpu_custom_call.1']
    %10 = vsyncpa [#allocation3], 0
    %s11 = scalar_lea.sflag [#allocation3], 1
    %12 = vsyncpa %s11, 0
    loop: start=0, step=1, limit=4
    $region2: #{tpu_custom_call.1} parent=1 // loop_pre_header
      _
    $region3: #{tpu_custom_call.1} parent=1 // loop_header
      %s14 = sphi 0, %s18
      %p15 = scmp.ge.s32.totalorder %s14, 4
      %s24 = sphi 0, %s26
      %s27 = sphi 0, %s24
      %s28 = sphi 0, %s27
      %s44 = sphi 0, %s28
      %s48 = sphi 0, %s48
      %s50 = sphi 0, %s48
      %s51 = sphi 0, %s50
      %s65 = sphi 0, %s51
      %s69 = sphi 0, %s69
      %s71 = sphi 0, %s69
      %s72 = sphi 0, %s71
      %s86 = sphi 0, %s72
      %s90 = sphi 0, %s90
      %s92 = sphi 0, %s90
      %s93 = sphi 0, %s92
      %s107 = sphi 0, %s93
      %s111 = sphi 0, %s111
      %s113 = sphi 0, %s111
      %s114 = sphi 0, %s113
      %s128 = sphi 0, %s114
      %s134 = sphi 0, %s136
      %s137 = sphi 0, %s134
      %s138 = sphi 0, %s137
      %s154 = sphi 0, %s138
    $region4: #{tpu_custom_call.1} parent=1 // loop_header_branch
      %17 = sbr.rel (%p15) target = $region8
    $region5: #{tpu_custom_call.1} parent=1 // loop_body
      %s19 = ssub.s32 %s14, 1
      %s20 = ssub.s32 %s14, 2
      %s21 = sadd.s32 %s14, 1
      %s22 = ssub.s32 %s14, %s21
      %p23 = scmp.eq.s32.totalorder %s22, 0
      %s25 = sadd.s32 %s24, 1
      %s26 = scalar_select %p23, %s24, %s25
      %p29 = pneg %p23
      %p30 = scmp.eq.s32.totalorder %s14, 1
      %p31 = por %p29, %p30
      %p32 = scmp.ne.s32.totalorder %s24, %s27
      %p33 = scmp.eq.s32.totalorder %s14, 0
      %p34 = por %p32, %p33
      %p35 = scmp.ne.s32.totalorder %s24, %s27
      %p36 = scmp.eq.s32.totalorder %s19, 1
      %p37 = por %p35, %p36
      %p38 = scmp.ne.s32.totalorder %s27, %s28
      %p39 = scmp.eq.s32.totalorder %s19, 0
      %p40 = por %p38, %p39
      %p41 = scmp.ne.s32.totalorder %s27, %s28
      %p42 = scmp.eq.s32.totalorder %s20, 1
      %p43 = por %p41, %p42
      %p45 = scmp.ne.s32.totalorder %s28, %s44
      %p46 = scmp.eq.s32.totalorder %s20, 0
      %p47 = por %p45, %p46
      %s49 = sadd.s32 %s48, 1
      %p52 = scmp.eq.s32.totalorder %s14, 1
      %p53 = scmp.ne.s32.totalorder %s48, %s50
      %p54 = scmp.eq.s32.totalorder %s14, 0
      %p55 = por %p53, %p54
      %p56 = scmp.ne.s32.totalorder %s48, %s50
      %p57 = scmp.eq.s32.totalorder %s19, 1
      %p58 = por %p56, %p57
      %p59 = scmp.ne.s32.totalorder %s50, %s51
      %p60 = scmp.eq.s32.totalorder %s19, 0
      %p61 = por %p59, %p60
      %p62 = scmp.ne.s32.totalorder %s50, %s51
      %p63 = scmp.eq.s32.totalorder %s20, 1
      %p64 = por %p62, %p63
      %p66 = scmp.ne.s32.totalorder %s51, %s65
      %p67 = scmp.eq.s32.totalorder %s20, 0
      %p68 = por %p66, %p67
      %s70 = sadd.s32 %s69, 1
      %p73 = scmp.eq.s32.totalorder %s14, 1
      %p74 = scmp.ne.s32.totalorder %s69, %s71
      %p75 = scmp.eq.s32.totalorder %s14, 0
      %p76 = por %p74, %p75
      %p77 = scmp.ne.s32.totalorder %s69, %s71
      %p78 = scmp.eq.s32.totalorder %s19, 1
      %p79 = por %p77, %p78
      %p80 = scmp.ne.s32.totalorder %s71, %s72
      %p81 = scmp.eq.s32.totalorder %s19, 0
      %p82 = por %p80, %p81
      %p83 = scmp.ne.s32.totalorder %s71, %s72
      %p84 = scmp.eq.s32.totalorder %s20, 1
      %p85 = por %p83, %p84
      %p87 = scmp.ne.s32.totalorder %s72, %s86
      %p88 = scmp.eq.s32.totalorder %s20, 0
      %p89 = por %p87, %p88
      %s91 = sadd.s32 %s90, 1
      %p94 = scmp.eq.s32.totalorder %s14, 1
      %p95 = scmp.ne.s32.totalorder %s90, %s92
      %p96 = scmp.eq.s32.totalorder %s14, 0
      %p97 = por %p95, %p96
      %p98 = scmp.ne.s32.totalorder %s90, %s92
      %p99 = scmp.eq.s32.totalorder %s19, 1
      %p100 = por %p98, %p99
      %p101 = scmp.ne.s32.totalorder %s92, %s93
      %p102 = scmp.eq.s32.totalorder %s19, 0
      %p103 = por %p101, %p102
      %p104 = scmp.ne.s32.totalorder %s92, %s93
      %p105 = scmp.eq.s32.totalorder %s20, 1
      %p106 = por %p104, %p105
      %p108 = scmp.ne.s32.totalorder %s93, %s107
      %p109 = scmp.eq.s32.totalorder %s20, 0
      %p110 = por %p108, %p109
      %s112 = sadd.s32 %s111, 1
      %p115 = scmp.eq.s32.totalorder %s14, 1
      %p116 = scmp.ne.s32.totalorder %s111, %s113
      %p117 = scmp.eq.s32.totalorder %s14, 0
      %p118 = por %p116, %p117
      %p119 = scmp.ne.s32.totalorder %s111, %s113
      %p120 = scmp.eq.s32.totalorder %s19, 1
      %p121 = por %p119, %p120
      %p122 = scmp.ne.s32.totalorder %s113, %s114
      %p123 = scmp.eq.s32.totalorder %s19, 0
      %p124 = por %p122, %p123
      %p125 = scmp.ne.s32.totalorder %s113, %s114
      %p126 = scmp.eq.s32.totalorder %s20, 1
      %p127 = por %p125, %p126
      %p129 = scmp.ne.s32.totalorder %s114, %s128
      %p130 = scmp.eq.s32.totalorder %s20, 0
      %p131 = por %p129, %p130
      %s132 = ssub.s32 %s14, %s21
      %p133 = scmp.eq.s32.totalorder %s132, 0
      %s135 = sadd.s32 %s134, 1
      %s136 = scalar_select %p133, %s134, %s135
      %p139 = pneg %p133
      %p140 = scmp.eq.s32.totalorder %s14, 1
      %p141 = por %p139, %p140
      %p142 = scmp.ne.s32.totalorder %s134, %s137
      %p143 = scmp.eq.s32.totalorder %s14, 0
      %p144 = por %p142, %p143
      %p145 = scmp.ne.s32.totalorder %s134, %s137
      %p146 = scmp.eq.s32.totalorder %s19, 1
      %p147 = por %p145, %p146
      %p148 = scmp.ne.s32.totalorder %s137, %s138
      %p149 = scmp.eq.s32.totalorder %s19, 0
      %p150 = por %p148, %p149
      %p151 = scmp.ne.s32.totalorder %s137, %s138
      %p152 = scmp.eq.s32.totalorder %s20, 1
      %p153 = por %p151, %p152
      %p155 = scmp.ne.s32.totalorder %s138, %s154
      %p156 = scmp.eq.s32.totalorder %s20, 0
      %p157 = por %p155, %p156
      %p158 = scmp.le.s32.totalorder 1, %s14
      %p159 = scmp.lt.s32.totalorder %s14, 3
      %p160 = pnand %p158, %p159
      %p161 = pneg %p160
      // Predicated region
      $region9: #{tpu_custom_call.1} parent=5 // pred_check
        _
      $region10: #{tpu_custom_call.1} parent=5 // pred_check_branch
        %163 = sbr.rel (%p160) target = $region12
      $region11: #{tpu_custom_call.1} parent=5 // pred_region
        %s164 = ssub.s32 %s14, 1
        // Predicated region
        $region13: #{tpu_custom_call.1} parent=11 // pred_check
          %p165 = pneg %p61
        $region14: #{tpu_custom_call.1} parent=11 // pred_check_branch
          %167 = sbr.rel (%p165) target = $region16
        $region15: #{tpu_custom_call.1} parent=11 // pred_region
          _
        $region16: #{tpu_custom_call.1} parent=11 // pred_fallthru
          _
        // Predicated region
        $region17: #{tpu_custom_call.1} parent=11 // pred_check
          %p168 = pneg %p82
        $region18: #{tpu_custom_call.1} parent=11 // pred_check_branch
          %170 = sbr.rel (%p168) target = $region20
        $region19: #{tpu_custom_call.1} parent=11 // pred_region
          _
        $region20: #{tpu_custom_call.1} parent=11 // pred_fallthru
          _
        // Predicated region
        $region21: #{tpu_custom_call.1} parent=11 // pred_check
          %p171 = pneg %p103
        $region22: #{tpu_custom_call.1} parent=11 // pred_check_branch
          %173 = sbr.rel (%p171) target = $region24
        $region23: #{tpu_custom_call.1} parent=11 // pred_region
          _
        $region24: #{tpu_custom_call.1} parent=11 // pred_fallthru
          _
        // Predicated region
        $region25: #{tpu_custom_call.1} parent=11 // pred_check
          %p174 = pneg %p124
        $region26: #{tpu_custom_call.1} parent=11 // pred_check_branch
          %176 = sbr.rel (%p174) target = $region28
        $region27: #{tpu_custom_call.1} parent=11 // pred_region
          _
        $region28: #{tpu_custom_call.1} parent=11 // pred_fallthru
          _
      $region12: #{tpu_custom_call.1} parent=5 // pred_fallthru
        _
      %p177 = scmp.lt.s32.totalorder %s14, 2
      // Predicated region
      $region29: #{tpu_custom_call.1} parent=5 // pred_check
        %p178 = pneg %p177
      $region30: #{tpu_custom_call.1} parent=5 // pred_check_branch
        %180 = sbr.rel (%p178) target = $region32
      $region31: #{tpu_custom_call.1} parent=5 // pred_region
        // Predicated region
        $region33: #{tpu_custom_call.1} parent=31 // pred_check
          %p181 = pneg %p34
        $region34: #{tpu_custom_call.1} parent=31 // pred_check_branch
          %183 = sbr.rel (%p181) target = $region36
        $region35: #{tpu_custom_call.1} parent=31 // pred_region
          %p184 = scmp.lt.s32.totalorder %s14, 1
          %s185 = scalar_select %p184, %s14, 1
          %s186 = smul.addr %s185, 8
          %s187 = scalar_lea.vmem %s0, %s186
        $region36: #{tpu_custom_call.1} parent=31 // pred_fallthru
          _
      $region32: #{tpu_custom_call.1} parent=5 // pred_fallthru
        _
      %p188 = scmp.le.s32.totalorder 1, %s14
      %p189 = scmp.lt.s32.totalorder %s14, 3
      %p190 = pnand %p188, %p189
      %p191 = pneg %p190
      // Predicated region
      $region37: #{tpu_custom_call.1} parent=5 // pred_check
        _
      $region38: #{tpu_custom_call.1} parent=5 // pred_check_branch
        %193 = sbr.rel (%p190) target = $region40
      $region39: #{tpu_custom_call.1} parent=5 // pred_region
        %s194 = ssub.s32 %s14, 1
        %p195 = scmp.lt.s32.totalorder %s19, 1
        %s196 = scalar_select %p195, %s19, 1
        %s197 = smul.addr %s196, 8
        %s198 = scalar_lea.vmem %s0, %s197
        %p199 = pneg %p40
        %p200 = pneg %p37
        %p201 = pneg %p61
        %p202 = pneg %p58
        %p203 = pneg %p82
        %p204 = pneg %p79
        %p205 = pneg %p103
        %p206 = pneg %p100
        %p207 = pneg %p124
        %p208 = pneg %p121
        %p209 = pneg %p150
        %p210 = pneg %p147
        %s211 = sand.u32 %s137, 1
        %s212 = scalar_lea.sflag [#allocation3], %s211
        %s213 = sand.u32 %s137, 1
        %s214 = smul.addr %s213, 8
        %s215 = scalar_lea.vmem [#allocation2], %s214
        %p216 = scmp.lt.s32.totalorder %s19, 1
        %s217 = scalar_select %p216, %s19, 1
        %s218 = smul.addr %s217, 8
        %s219 = scalar_lea.vmem %s0, %s218
        %v220 = vld [vmem:[%s219] sm:$0xff]
        %v221 = vld [vmem:[%s1] sm:$0xff]
        %v222 = vld [vmem:[%s1 + $0x8] sm:$0xff]
        %v223 = vld [vmem:[%s2] sm:$0x1]
        %v225 = vlaneseq
        %v226 = vshrl.u32 %v225, 7
        %v227 = vsub.s32 0, %v226
        %v228 = vrot.slane %v223, %v227
        %vm230 = vcmask 130048
        %v232 = vsel %vm230, %v220, 0
        %234 = vmatprep.subr.mxu0 0.0
        %235 = vmatpush1.msra.mxu0 %v221
        %236 = vmatprep.subr.mxu0 0.0
        %237 = vmatpush1.msra.mxu0 %v222
        %238 = vmatprep.subr.mxu0 0.0
        %239 = vmatpush1.msra.mxu0 0.0
        %240 = vmatprep.subr.mxu0 0.0
        %241 = vmatpush1.msra.mxu0 0.0
        %242 = vmatprep.subr.mxu0 0.0
        %243 = vmatpush1.msra.mxu0 0.0
        %244 = vmatprep.subr.mxu0 0.0
        %245 = vmatpush1.msra.mxu0 0.0
        %246 = vmatprep.subr.mxu0 0.0
        %247 = vmatpush1.msra.mxu0 0.0
        %248 = vmatprep.subr.mxu0 0.0
        %249 = vmatpush1.msra.mxu0 0.0
        %250 = vmatprep.subr.mxu0 0.0
        %251 = vmatpush1.msra.mxu0 0.0
        %252 = vmatprep.subr.mxu0 0.0
        %253 = vmatpush1.msra.mxu0 0.0
        %254 = vmatprep.subr.mxu0 0.0
        %255 = vmatpush1.msra.mxu0 0.0
        %256 = vmatprep.subr.mxu0 0.0
        %257 = vmatpush1.msra.mxu0 0.0
        %258 = vmatprep.subr.mxu0 0.0
        %259 = vmatpush1.msra.mxu0 0.0
        %260 = vmatprep.subr.mxu0 0.0
        %261 = vmatpush1.msra.mxu0 0.0
        %262 = vmatprep.subr.mxu0 0.0
        %263 = vmatpush1.msra.mxu0 0.0
        %264 = vmatprep.subr.mxu0 0.0
        %265 = vmatpush1.msra.mxu0 0.0
        %266 = vmatprep.subr.mxu0 0.0
        %267 = vmatpush1.msra.mxu0 0.0
        %268 = vmatprep.subr.mxu0 0.0
        %269 = vmatpush1.msra.mxu0 0.0
        %270 = vmatprep.subr.mxu0 0.0
        %271 = vmatpush1.msra.mxu0 0.0
        %272 = vmatprep.subr.mxu0 0.0
        %273 = vmatpush1.msra.mxu0 0.0
        %274 = vmatprep.subr.mxu0 0.0
        %275 = vmatpush1.msra.mxu0 0.0
        %276 = vmatprep.subr.mxu0 0.0
        %277 = vmatpush1.msra.mxu0 0.0
        %278 = vmatprep.subr.mxu0 0.0
        %279 = vmatpush1.msra.mxu0 0.0
        %280 = vmatprep.subr.mxu0 0.0
        %281 = vmatpush1.msra.mxu0 0.0
        %282 = vmatprep.subr.mxu0 0.0
        %283 = vmatpush1.msra.mxu0 0.0
        %284 = vmatprep.subr.mxu0 0.0
        %285 = vmatpush1.msra.mxu0 0.0
        %286 = vmatprep.subr.mxu0 0.0
        %287 = vmatpush1.msra.mxu0 0.0
        %288 = vmatprep.subr.mxu0 0.0
        %289 = vmatpush1.msra.mxu0 0.0
        %290 = vmatprep.subr.mxu0 0.0
        %291 = vmatpush1.msra.mxu0 0.0
        %292 = vmatprep.subr.mxu0 0.0
        %293 = vmatpush1.msra.mxu0 0.0
        %294 = vmatprep.subr.mxu0 0.0
        %295 = vmatpush1.msra.mxu0 0.0
        %296 = vmatprep.subr.mxu0 0.0
        %297 = vmatpush1.msra.mxu0 0.0
        %298 = vmatprep.mubr.f32.mxu0 0.0
        %299 = vmatmul.mubr.f32.gmra.mrb[0].mxu0 %v232
        %v300 = vpop.f32.mrb[0].mxu0
        %v301 = vadd.f32 %v228, %v300
        %v302 = vpop.f32.mrb[0].mxu0
        %303 = vdwg.mxu0
        %v304 = vld [vmem:[%s3] sm:$0xff]
        %v305 = vld [vmem:[%s3 + $0x8] sm:$0xff]
        %v306 = vld [vmem:[%s3 + $0x10] sm:$0xff]
        %v307 = vld [vmem:[%s3 + $0x18] sm:$0xff]
        %v308 = vld [vmem:[%s3 + $0x20] sm:$0xff]
        %v309 = vld [vmem:[%s3 + $0x28] sm:$0xff]
        %v310 = vld [vmem:[%s3 + $0x30] sm:$0xff]
        %v311 = vld [vmem:[%s3 + $0x38] sm:$0xff]
        %vm312 = vcmask 261120
        %v314 = vsel %vm312, %v301, 0
        %v317 = vsel %vm312, %v304, 0
        %v320 = vsel %vm312, %v305, 0
        %v323 = vsel %vm312, %v306, 0
        %v326 = vsel %vm312, %v307, 0
        %v329 = vsel %vm312, %v308, 0
        %v332 = vsel %vm312, %v309, 0
        %v335 = vsel %vm312, %v310, 0
        %v338 = vsel %vm312, %v311, 0
        %340 = vmatprep.subr.mxu0 0.0
        %341 = vmatpush1.xpose.msra.mxu0 %v317
        %342 = vmatprep.subr.mxu0 0.0
        %343 = vmatpush1.xpose.msra.mxu0 %v320
        %344 = vmatprep.subr.mxu0 0.0
        %345 = vmatpush1.xpose.msra.mxu0 %v323
        %346 = vmatprep.subr.mxu0 0.0
        %347 = vmatpush1.xpose.msra.mxu0 %v326
        %348 = vmatprep.subr.mxu0 0.0
        %349 = vmatpush1.xpose.msra.mxu0 %v329
        %350 = vmatprep.subr.mxu0 0.0
        %351 = vmatpush1.xpose.msra.mxu0 %v332
        %352 = vmatprep.subr.mxu0 0.0
        %353 = vmatpush1.xpose.msra.mxu0 %v335
        %354 = vmatprep.subr.mxu0 0.0
        %355 = vmatpush1.xpose.msra.mxu0 %v338
        %356 = vmatprep.subr.mxu0 0.0
        %357 = vmatpush1.xpose.msra.mxu0 0.0
        %358 = vmatprep.subr.mxu0 0.0
        %359 = vmatpush1.xpose.msra.mxu0 0.0
        %360 = vmatprep.subr.mxu0 0.0
        %361 = vmatpush1.xpose.msra.mxu0 0.0
        %362 = vmatprep.subr.mxu0 0.0
        %363 = vmatpush1.xpose.msra.mxu0 0.0
        %364 = vmatprep.subr.mxu0 0.0
        %365 = vmatpush1.xpose.msra.mxu0 0.0
        %366 = vmatprep.subr.mxu0 0.0
        %367 = vmatpush1.xpose.msra.mxu0 0.0
        %368 = vmatprep.subr.mxu0 0.0
        %369 = vmatpush1.xpose.msra.mxu0 0.0
        %370 = vmatprep.subr.mxu0 0.0
        %371 = vmatpush1.xpose.msra.mxu0 0.0
        %372 = vmatprep.subr.mxu0 0.0
        %373 = vmatpush1.xpose.msra.mxu0 0.0
        %374 = vmatprep.subr.mxu0 0.0
        %375 = vmatpush1.xpose.msra.mxu0 0.0
        %376 = vmatprep.subr.mxu0 0.0
        %377 = vmatpush1.xpose.msra.mxu0 0.0
        %378 = vmatprep.subr.mxu0 0.0
        %379 = vmatpush1.xpose.msra.mxu0 0.0
        %380 = vmatprep.subr.mxu0 0.0
        %381 = vmatpush1.xpose.msra.mxu0 0.0
        %382 = vmatprep.subr.mxu0 0.0
        %383 = vmatpush1.xpose.msra.mxu0 0.0
        %384 = vmatprep.subr.mxu0 0.0
        %385 = vmatpush1.xpose.msra.mxu0 0.0
        %386 = vmatprep.subr.mxu0 0.0
        %387 = vmatpush1.xpose.msra.mxu0 0.0
        %388 = vmatprep.subr.mxu0 0.0
        %389 = vmatpush1.xpose.msra.mxu0 0.0
        %390 = vmatprep.subr.mxu0 0.0
        %391 = vmatpush1.xpose.msra.mxu0 0.0
        %392 = vmatprep.subr.mxu0 0.0
        %393 = vmatpush1.xpose.msra.mxu0 0.0
        %394 = vmatprep.subr.mxu0 0.0
        %395 = vmatpush1.xpose.msra.mxu0 0.0
        %396 = vmatprep.subr.mxu0 0.0
        %397 = vmatpush1.xpose.msra.mxu0 0.0
        %398 = vmatprep.subr.mxu0 0.0
        %399 = vmatpush1.xpose.msra.mxu0 0.0
        %400 = vmatprep.subr.mxu0 0.0
        %401 = vmatpush1.xpose.msra.mxu0 0.0
        %402 = vmatprep.subr.mxu0 0.0
        %403 = vmatpush1.xpose.msra.mxu0 0.0
        %404 = vmatprep.mubr.f32.mxu0 0.0
        %405 = vmatmul.mubr.f32.gmra.mrb[0].mxu0 %v314
        %v406 = vpop.f32.mrb[0].mxu0
        %v407 = vadd.f32 0.0, %v406
        %v408 = vpop.f32.mrb[0].mxu0
        %409 = vdwg.mxu0
        %v410 = vld [vmem:[%s4] sm:$0x1]
        %v411 = vlaneseq
        %v412 = vshrl.u32 %v411, 7
        %v413 = vsub.s32 0, %v412
        %v414 = vrot.slane %v410, %v413
        %v415 = vsub.f32 %v414, %v407
        %vm416 = vcmask 523264
        %v417 = vsel %vm416, %v415, inf
        %418 = vmin.xlane.f32.xlu0 %v417
        %v419 = vpop.xlane.xlu0 %418
        %vm420 = vcmp.le.f32.partialorder %v415, %v419
        %v421 = vsel %vm420, 1, 0
        %v422 = vcvt.s32.f32 %v421
        %v424 = vsel %vm416, %v422, 0
        %426 = vmatprep.subr.mxu0 0.0
        %427 = vmatpush1.msra.mxu0 %v304
        %428 = vmatprep.subr.mxu0 0.0
        %429 = vmatpush1.msra.mxu0 %v305
        %430 = vmatprep.subr.mxu0 0.0
        %431 = vmatpush1.msra.mxu0 %v306
        %432 = vmatprep.subr.mxu0 0.0
        %433 = vmatpush1.msra.mxu0 %v307
        %434 = vmatprep.subr.mxu0 0.0
        %435 = vmatpush1.msra.mxu0 %v308
        %436 = vmatprep.subr.mxu0 0.0
        %437 = vmatpush1.msra.mxu0 %v309
        %438 = vmatprep.subr.mxu0 0.0
        %439 = vmatpush1.msra.mxu0 %v310
        %440 = vmatprep.subr.mxu0 0.0
        %441 = vmatpush1.msra.mxu0 %v311
        %442 = vmatprep.subr.mxu0 0.0
        %443 = vmatpush1.msra.mxu0 0.0
        %444 = vmatprep.subr.mxu0 0.0
        %445 = vmatpush1.msra.mxu0 0.0
        %446 = vmatprep.subr.mxu0 0.0
        %447 = vmatpush1.msra.mxu0 0.0
        %448 = vmatprep.subr.mxu0 0.0
        %449 = vmatpush1.msra.mxu0 0.0
        %450 = vmatprep.subr.mxu0 0.0
        %451 = vmatpush1.msra.mxu0 0.0
        %452 = vmatprep.subr.mxu0 0.0
        %453 = vmatpush1.msra.mxu0 0.0
        %454 = vmatprep.subr.mxu0 0.0
        %455 = vmatpush1.msra.mxu0 0.0
        %456 = vmatprep.subr.mxu0 0.0
        %457 = vmatpush1.msra.mxu0 0.0
        %458 = vmatprep.subr.mxu0 0.0
        %459 = vmatpush1.msra.mxu0 0.0
        %460 = vmatprep.subr.mxu0 0.0
        %461 = vmatpush1.msra.mxu0 0.0
        %462 = vmatprep.subr.mxu0 0.0
        %463 = vmatpush1.msra.mxu0 0.0
        %464 = vmatprep.subr.mxu0 0.0
        %465 = vmatpush1.msra.mxu0 0.0
        %466 = vmatprep.subr.mxu0 0.0
        %467 = vmatpush1.msra.mxu0 0.0
        %468 = vmatprep.subr.mxu0 0.0
        %469 = vmatpush1.msra.mxu0 0.0
        %470 = vmatprep.subr.mxu0 0.0
        %471 = vmatpush1.msra.mxu0 0.0
        %472 = vmatprep.subr.mxu0 0.0
        %473 = vmatpush1.msra.mxu0 0.0
        %474 = vmatprep.subr.mxu0 0.0
        %475 = vmatpush1.msra.mxu0 0.0
        %476 = vmatprep.subr.mxu0 0.0
        %477 = vmatpush1.msra.mxu0 0.0
        %478 = vmatprep.subr.mxu0 0.0
        %479 = vmatpush1.msra.mxu0 0.0
        %480 = vmatprep.subr.mxu0 0.0
        %481 = vmatpush1.msra.mxu0 0.0
        %482 = vmatprep.subr.mxu0 0.0
        %483 = vmatpush1.msra.mxu0 0.0
        %484 = vmatprep.subr.mxu0 0.0
        %485 = vmatpush1.msra.mxu0 0.0
        %486 = vmatprep.subr.mxu0 0.0
        %487 = vmatpush1.msra.mxu0 0.0
        %488 = vmatprep.subr.mxu0 0.0
        %489 = vmatpush1.msra.mxu0 0.0
        %490 = vmatprep.mubr.f32.mxu0 0.0
        %491 = vmatmul.mubr.f32.gmra.mrb[0].mxu0 %v424
        %v492 = vpop.f32.mrb[0].mxu0
        %v493 = vadd.f32 0.0, %v492
        %v494 = vpop.f32.mrb[0].mxu0
        %495 = vdwg.mxu0
        %v496 = vsub.f32 %v301, %v493
        %v497 = vadd.f32 %v493, 0.0
        %s498 = scalar_lea.vmem %s3, 64
        %v499 = vld [vmem:[%s498] sm:$0xff]
        %v500 = vld [vmem:[%s498 + $0x8] sm:$0xff]
        %v501 = vld [vmem:[%s498 + $0x10] sm:$0xff]
        %v502 = vld [vmem:[%s498 + $0x18] sm:$0xff]
        %v503 = vld [vmem:[%s498 + $0x20] sm:$0xff]
        %v504 = vld [vmem:[%s498 + $0x28] sm:$0xff]
        %v505 = vld [vmem:[%s498 + $0x30] sm:$0xff]
        %v506 = vld [vmem:[%s498 + $0x38] sm:$0xff]
        %v508 = vsel %vm312, %v496, 0
        %v511 = vsel %vm312, %v499, 0
        %v514 = vsel %vm312, %v500, 0
        %v517 = vsel %vm312, %v501, 0
        %v520 = vsel %vm312, %v502, 0
        %v523 = vsel %vm312, %v503, 0
        %v526 = vsel %vm312, %v504, 0
        %v529 = vsel %vm312, %v505, 0
        %v532 = vsel %vm312, %v506, 0
        %534 = vmatprep.subr.mxu0 0.0
        %535 = vmatpush1.xpose.msra.mxu0 %v511
        %536 = vmatprep.subr.mxu0 0.0
        %537 = vmatpush1.xpose.msra.mxu0 %v514
        %538 = vmatprep.subr.mxu0 0.0
        %539 = vmatpush1.xpose.msra.mxu0 %v517
        %540 = vmatprep.subr.mxu0 0.0
        %541 = vmatpush1.xpose.msra.mxu0 %v520
        %542 = vmatprep.subr.mxu0 0.0
        %543 = vmatpush1.xpose.msra.mxu0 %v523
        %544 = vmatprep.subr.mxu0 0.0
        %545 = vmatpush1.xpose.msra.mxu0 %v526
        %546 = vmatprep.subr.mxu0 0.0
        %547 = vmatpush1.xpose.msra.mxu0 %v529
        %548 = vmatprep.subr.mxu0 0.0
        %549 = vmatpush1.xpose.msra.mxu0 %v532
        %550 = vmatprep.subr.mxu0 0.0
        %551 = vmatpush1.xpose.msra.mxu0 0.0
        %552 = vmatprep.subr.mxu0 0.0
        %553 = vmatpush1.xpose.msra.mxu0 0.0
        %554 = vmatprep.subr.mxu0 0.0
        %555 = vmatpush1.xpose.msra.mxu0 0.0
        %556 = vmatprep.subr.mxu0 0.0
        %557 = vmatpush1.xpose.msra.mxu0 0.0
        %558 = vmatprep.subr.mxu0 0.0
        %559 = vmatpush1.xpose.msra.mxu0 0.0
        %560 = vmatprep.subr.mxu0 0.0
        %561 = vmatpush1.xpose.msra.mxu0 0.0
        %562 = vmatprep.subr.mxu0 0.0
        %563 = vmatpush1.xpose.msra.mxu0 0.0
        %564 = vmatprep.subr.mxu0 0.0
        %565 = vmatpush1.xpose.msra.mxu0 0.0
        %566 = vmatprep.subr.mxu0 0.0
        %567 = vmatpush1.xpose.msra.mxu0 0.0
        %568 = vmatprep.subr.mxu0 0.0
        %569 = vmatpush1.xpose.msra.mxu0 0.0
        %570 = vmatprep.subr.mxu0 0.0
        %571 = vmatpush1.xpose.msra.mxu0 0.0
        %572 = vmatprep.subr.mxu0 0.0
        %573 = vmatpush1.xpose.msra.mxu0 0.0
        %574 = vmatprep.subr.mxu0 0.0
        %575 = vmatpush1.xpose.msra.mxu0 0.0
        %576 = vmatprep.subr.mxu0 0.0
        %577 = vmatpush1.xpose.msra.mxu0 0.0
        %578 = vmatprep.subr.mxu0 0.0
        %579 = vmatpush1.xpose.msra.mxu0 0.0
        %580 = vmatprep.subr.mxu0 0.0
        %581 = vmatpush1.xpose.msra.mxu0 0.0
        %582 = vmatprep.subr.mxu0 0.0
        %583 = vmatpush1.xpose.msra.mxu0 0.0
        %584 = vmatprep.subr.mxu0 0.0
        %585 = vmatpush1.xpose.msra.mxu0 0.0
        %586 = vmatprep.subr.mxu0 0.0
        %587 = vmatpush1.xpose.msra.mxu0 0.0
        %588 = vmatprep.subr.mxu0 0.0
        %589 = vmatpush1.xpose.msra.mxu0 0.0
        %590 = vmatprep.subr.mxu0 0.0
        %591 = vmatpush1.xpose.msra.mxu0 0.0
        %592 = vmatprep.subr.mxu0 0.0
        %593 = vmatpush1.xpose.msra.mxu0 0.0
        %594 = vmatprep.subr.mxu0 0.0
        %595 = vmatpush1.xpose.msra.mxu0 0.0
        %596 = vmatprep.subr.mxu0 0.0
        %597 = vmatpush1.xpose.msra.mxu0 0.0
        %598 = vmatprep.mubr.f32.mxu0 0.0
        %599 = vmatmul.mubr.f32.gmra.mrb[0].mxu0 %v508
        %v600 = vpop.f32.mrb[0].mxu0
        %v601 = vadd.f32 0.0, %v600
        %v602 = vpop.f32.mrb[0].mxu0
        %603 = vdwg.mxu0
        %v604 = vld [vmem:[%s4 + $0x1] sm:$0x1]
        %v605 = vlaneseq
        %v606 = vshrl.u32 %v605, 7
        %v607 = vsub.s32 0, %v606
        %v608 = vrot.slane %v604, %v607
        %v609 = vsub.f32 %v608, %v601
        %v610 = vsel %vm416, %v609, inf
        %611 = vmin.xlane.f32.xlu0 %v610
        %v612 = vpop.xlane.xlu0 %611
        %vm613 = vcmp.le.f32.partialorder %v609, %v612
        %v614 = vsel %vm613, 1, 0
        %v615 = vcvt.s32.f32 %v614
        %v617 = vsel %vm416, %v615, 0
        %619 = vmatprep.subr.mxu0 0.0
        %620 = vmatpush1.msra.mxu0 %v499
        %621 = vmatprep.subr.mxu0 0.0
        %622 = vmatpush1.msra.mxu0 %v500
        %623 = vmatprep.subr.mxu0 0.0
        %624 = vmatpush1.msra.mxu0 %v501
        %625 = vmatprep.subr.mxu0 0.0
        %626 = vmatpush1.msra.mxu0 %v502
        %627 = vmatprep.subr.mxu0 0.0
        %628 = vmatpush1.msra.mxu0 %v503
        %629 = vmatprep.subr.mxu0 0.0
        %630 = vmatpush1.msra.mxu0 %v504
        %631 = vmatprep.subr.mxu0 0.0
        %632 = vmatpush1.msra.mxu0 %v505
        %633 = vmatprep.subr.mxu0 0.0
        %634 = vmatpush1.msra.mxu0 %v506
        %635 = vmatprep.subr.mxu0 0.0
        %636 = vmatpush1.msra.mxu0 0.0
        %637 = vmatprep.subr.mxu0 0.0
        %638 = vmatpush1.msra.mxu0 0.0
        %639 = vmatprep.subr.mxu0 0.0
        %640 = vmatpush1.msra.mxu0 0.0
        %641 = vmatprep.subr.mxu0 0.0
        %642 = vmatpush1.msra.mxu0 0.0
        %643 = vmatprep.subr.mxu0 0.0
        %644 = vmatpush1.msra.mxu0 0.0
        %645 = vmatprep.subr.mxu0 0.0
        %646 = vmatpush1.msra.mxu0 0.0
        %647 = vmatprep.subr.mxu0 0.0
        %648 = vmatpush1.msra.mxu0 0.0
        %649 = vmatprep.subr.mxu0 0.0
        %650 = vmatpush1.msra.mxu0 0.0
        %651 = vmatprep.subr.mxu0 0.0
        %652 = vmatpush1.msra.mxu0 0.0
        %653 = vmatprep.subr.mxu0 0.0
        %654 = vmatpush1.msra.mxu0 0.0
        %655 = vmatprep.subr.mxu0 0.0
        %656 = vmatpush1.msra.mxu0 0.0
        %657 = vmatprep.subr.mxu0 0.0
        %658 = vmatpush1.msra.mxu0 0.0
        %659 = vmatprep.subr.mxu0 0.0
        %660 = vmatpush1.msra.mxu0 0.0
        %661 = vmatprep.subr.mxu0 0.0
        %662 = vmatpush1.msra.mxu0 0.0
        %663 = vmatprep.subr.mxu0 0.0
        %664 = vmatpush1.msra.mxu0 0.0
        %665 = vmatprep.subr.mxu0 0.0
        %666 = vmatpush1.msra.mxu0 0.0
        %667 = vmatprep.subr.mxu0 0.0
        %668 = vmatpush1.msra.mxu0 0.0
        %669 = vmatprep.subr.mxu0 0.0
        %670 = vmatpush1.msra.mxu0 0.0
        %671 = vmatprep.subr.mxu0 0.0
        %672 = vmatpush1.msra.mxu0 0.0
        %673 = vmatprep.subr.mxu0 0.0
        %674 = vmatpush1.msra.mxu0 0.0
        %675 = vmatprep.subr.mxu0 0.0
        %676 = vmatpush1.msra.mxu0 0.0
        %677 = vmatprep.subr.mxu0 0.0
        %678 = vmatpush1.msra.mxu0 0.0
        %679 = vmatprep.subr.mxu0 0.0
        %680 = vmatpush1.msra.mxu0 0.0
        %681 = vmatprep.subr.mxu0 0.0
        %682 = vmatpush1.msra.mxu0 0.0
        %683 = vmatprep.mubr.f32.mxu0 0.0
        %684 = vmatmul.mubr.f32.gmra.mrb[0].mxu0 %v617
        %v685 = vpop.f32.mrb[0].mxu0
        %v686 = vadd.f32 0.0, %v685
        %v687 = vpop.f32.mrb[0].mxu0
        %688 = vdwg.mxu0
        %v689 = vsub.f32 %v496, %v686
        %v690 = vadd.f32 %v497, %v686
        %s691 = scalar_lea.vmem %s3, 128
        %v692 = vld [vmem:[%s691] sm:$0xff]
        %v693 = vld [vmem:[%s691 + $0x8] sm:$0xff]
        %v694 = vld [vmem:[%s691 + $0x10] sm:$0xff]
        %v695 = vld [vmem:[%s691 + $0x18] sm:$0xff]
        %v696 = vld [vmem:[%s691 + $0x20] sm:$0xff]
        %v697 = vld [vmem:[%s691 + $0x28] sm:$0xff]
        %v698 = vld [vmem:[%s691 + $0x30] sm:$0xff]
        %v699 = vld [vmem:[%s691 + $0x38] sm:$0xff]
        %v701 = vsel %vm312, %v689, 0
        %v704 = vsel %vm312, %v692, 0
        %v707 = vsel %vm312, %v693, 0
        %v710 = vsel %vm312, %v694, 0
        %v713 = vsel %vm312, %v695, 0
        %v716 = vsel %vm312, %v696, 0
        %v719 = vsel %vm312, %v697, 0
        %v722 = vsel %vm312, %v698, 0
        %v725 = vsel %vm312, %v699, 0
        %727 = vmatprep.subr.mxu0 0.0
        %728 = vmatpush1.xpose.msra.mxu0 %v704
        %729 = vmatprep.subr.mxu0 0.0
        %730 = vmatpush1.xpose.msra.mxu0 %v707
        %731 = vmatprep.subr.mxu0 0.0
        %732 = vmatpush1.xpose.msra.mxu0 %v710
        %733 = vmatprep.subr.mxu0 0.0
        %734 = vmatpush1.xpose.msra.mxu0 %v713
        %735 = vmatprep.subr.mxu0 0.0
        %736 = vmatpush1.xpose.msra.mxu0 %v716
        %737 = vmatprep.subr.mxu0 0.0
        %738 = vmatpush1.xpose.msra.mxu0 %v719
        %739 = vmatprep.subr.mxu0 0.0
        %740 = vmatpush1.xpose.msra.mxu0 %v722
        %741 = vmatprep.subr.mxu0 0.0
        %742 = vmatpush1.xpose.msra.mxu0 %v725
        %743 = vmatprep.subr.mxu0 0.0
        %744 = vmatpush1.xpose.msra.mxu0 0.0
        %745 = vmatprep.subr.mxu0 0.0
        %746 = vmatpush1.xpose.msra.mxu0 0.0
        %747 = vmatprep.subr.mxu0 0.0
        %748 = vmatpush1.xpose.msra.mxu0 0.0
        %749 = vmatprep.subr.mxu0 0.0
        %750 = vmatpush1.xpose.msra.mxu0 0.0
        %751 = vmatprep.subr.mxu0 0.0
        %752 = vmatpush1.xpose.msra.mxu0 0.0
        %753 = vmatprep.subr.mxu0 0.0
        %754 = vmatpush1.xpose.msra.mxu0 0.0
        %755 = vmatprep.subr.mxu0 0.0
        %756 = vmatpush1.xpose.msra.mxu0 0.0
        %757 = vmatprep.subr.mxu0 0.0
        %758 = vmatpush1.xpose.msra.mxu0 0.0
        %759 = vmatprep.subr.mxu0 0.0
        %760 = vmatpush1.xpose.msra.mxu0 0.0
        %761 = vmatprep.subr.mxu0 0.0
        %762 = vmatpush1.xpose.msra.mxu0 0.0
        %763 = vmatprep.subr.mxu0 0.0
        %764 = vmatpush1.xpose.msra.mxu0 0.0
        %765 = vmatprep.subr.mxu0 0.0
        %766 = vmatpush1.xpose.msra.mxu0 0.0
        %767 = vmatprep.subr.mxu0 0.0
        %768 = vmatpush1.xpose.msra.mxu0 0.0
        %769 = vmatprep.subr.mxu0 0.0
        %770 = vmatpush1.xpose.msra.mxu0 0.0
        %771 = vmatprep.subr.mxu0 0.0
        %772 = vmatpush1.xpose.msra.mxu0 0.0
        %773 = vmatprep.subr.mxu0 0.0
        %774 = vmatpush1.xpose.msra.mxu0 0.0
        %775 = vmatprep.subr.mxu0 0.0
        %776 = vmatpush1.xpose.msra.mxu0 0.0
        %777 = vmatprep.subr.mxu0 0.0
        %778 = vmatpush1.xpose.msra.mxu0 0.0
        %779 = vmatprep.subr.mxu0 0.0
        %780 = vmatpush1.xpose.msra.mxu0 0.0
        %781 = vmatprep.subr.mxu0 0.0
        %782 = vmatpush1.xpose.msra.mxu0 0.0
        %783 = vmatprep.subr.mxu0 0.0
        %784 = vmatpush1.xpose.msra.mxu0 0.0
        %785 = vmatprep.subr.mxu0 0.0
        %786 = vmatpush1.xpose.msra.mxu0 0.0
        %787 = vmatprep.subr.mxu0 0.0
        %788 = vmatpush1.xpose.msra.mxu0 0.0
        %789 = vmatprep.subr.mxu0 0.0
        %790 = vmatpush1.xpose.msra.mxu0 0.0
        %791 = vmatprep.mubr.f32.mxu0 0.0
        %792 = vmatmul.mubr.f32.gmra.mrb[0].mxu0 %v701
        %v793 = vpop.f32.mrb[0].mxu0
        %v794 = vadd.f32 0.0, %v793
        %v795 = vpop.f32.mrb[0].mxu0
        %796 = vdwg.mxu0
        %v797 = vld [vmem:[%s4 + $0x2] sm:$0x1]
        %v798 = vlaneseq
        %v799 = vshrl.u32 %v798, 7
        %v800 = vsub.s32 0, %v799
        %v801 = vrot.slane %v797, %v800
        %v802 = vsub.f32 %v801, %v794
        %v803 = vsel %vm416, %v802, inf
        %804 = vmin.xlane.f32.xlu0 %v803
        %v805 = vpop.xlane.xlu0 %804
        %vm806 = vcmp.le.f32.partialorder %v802, %v805
        %v807 = vsel %vm806, 1, 0
        %v808 = vcvt.s32.f32 %v807
        %v810 = vsel %vm416, %v808, 0
        %812 = vmatprep.subr.mxu0 0.0
        %813 = vmatpush1.msra.mxu0 %v692
        %814 = vmatprep.subr.mxu0 0.0
        %815 = vmatpush1.msra.mxu0 %v693
        %816 = vmatprep.subr.mxu0 0.0
        %817 = vmatpush1.msra.mxu0 %v694
        %818 = vmatprep.subr.mxu0 0.0
        %819 = vmatpush1.msra.mxu0 %v695
        %820 = vmatprep.subr.mxu0 0.0
        %821 = vmatpush1.msra.mxu0 %v696
        %822 = vmatprep.subr.mxu0 0.0
        %823 = vmatpush1.msra.mxu0 %v697
        %824 = vmatprep.subr.mxu0 0.0
        %825 = vmatpush1.msra.mxu0 %v698
        %826 = vmatprep.subr.mxu0 0.0
        %827 = vmatpush1.msra.mxu0 %v699
        %828 = vmatprep.subr.mxu0 0.0
        %829 = vmatpush1.msra.mxu0 0.0
        %830 = vmatprep.subr.mxu0 0.0
        %831 = vmatpush1.msra.mxu0 0.0
        %832 = vmatprep.subr.mxu0 0.0
        %833 = vmatpush1.msra.mxu0 0.0
        %834 = vmatprep.subr.mxu0 0.0
        %835 = vmatpush1.msra.mxu0 0.0
        %836 = vmatprep.subr.mxu0 0.0
        %837 = vmatpush1.msra.mxu0 0.0
        %838 = vmatprep.subr.mxu0 0.0
        %839 = vmatpush1.msra.mxu0 0.0
        %840 = vmatprep.subr.mxu0 0.0
        %841 = vmatpush1.msra.mxu0 0.0
        %842 = vmatprep.subr.mxu0 0.0
        %843 = vmatpush1.msra.mxu0 0.0
        %844 = vmatprep.subr.mxu0 0.0
        %845 = vmatpush1.msra.mxu0 0.0
        %846 = vmatprep.subr.mxu0 0.0
        %847 = vmatpush1.msra.mxu0 0.0
        %848 = vmatprep.subr.mxu0 0.0
        %849 = vmatpush1.msra.mxu0 0.0
        %850 = vmatprep.subr.mxu0 0.0
        %851 = vmatpush1.msra.mxu0 0.0
        %852 = vmatprep.subr.mxu0 0.0
        %853 = vmatpush1.msra.mxu0 0.0
        %854 = vmatprep.subr.mxu0 0.0
        %855 = vmatpush1.msra.mxu0 0.0
        %856 = vmatprep.subr.mxu0 0.0
        %857 = vmatpush1.msra.mxu0 0.0
        %858 = vmatprep.subr.mxu0 0.0
        %859 = vmatpush1.msra.mxu0 0.0
        %860 = vmatprep.subr.mxu0 0.0
        %861 = vmatpush1.msra.mxu0 0.0
        %862 = vmatprep.subr.mxu0 0.0
        %863 = vmatpush1.msra.mxu0 0.0
        %864 = vmatprep.subr.mxu0 0.0
        %865 = vmatpush1.msra.mxu0 0.0
        %866 = vmatprep.subr.mxu0 0.0
        %867 = vmatpush1.msra.mxu0 0.0
        %868 = vmatprep.subr.mxu0 0.0
        %869 = vmatpush1.msra.mxu0 0.0
        %870 = vmatprep.subr.mxu0 0.0
        %871 = vmatpush1.msra.mxu0 0.0
        %872 = vmatprep.subr.mxu0 0.0
        %873 = vmatpush1.msra.mxu0 0.0
        %874 = vmatprep.subr.mxu0 0.0
        %875 = vmatpush1.msra.mxu0 0.0
        %876 = vmatprep.mubr.f32.mxu0 0.0
        %877 = vmatmul.mubr.f32.gmra.mrb[0].mxu0 %v810
        %v878 = vpop.f32.mrb[0].mxu0
        %v879 = vadd.f32 0.0, %v878
        %v880 = vpop.f32.mrb[0].mxu0
        %881 = vdwg.mxu0
        %v882 = vsub.f32 %v689, %v879
        %v883 = vadd.f32 %v690, %v879
        %s884 = scalar_lea.vmem %s3, 192
        %v885 = vld [vmem:[%s884] sm:$0xff]
        %v886 = vld [vmem:[%s884 + $0x8] sm:$0xff]
        %v887 = vld [vmem:[%s884 + $0x10] sm:$0xff]
        %v888 = vld [vmem:[%s884 + $0x18] sm:$0xff]
        %v889 = vld [vmem:[%s884 + $0x20] sm:$0xff]
        %v890 = vld [vmem:[%s884 + $0x28] sm:$0xff]
        %v891 = vld [vmem:[%s884 + $0x30] sm:$0xff]
        %v892 = vld [vmem:[%s884 + $0x38] sm:$0xff]
        %v894 = vsel %vm312, %v882, 0
        %v897 = vsel %vm312, %v885, 0
        %v900 = vsel %vm312, %v886, 0
        %v903 = vsel %vm312, %v887, 0
        %v906 = vsel %vm312, %v888, 0
        %v909 = vsel %vm312, %v889, 0
        %v912 = vsel %vm312, %v890, 0
        %v915 = vsel %vm312, %v891, 0
        %v918 = vsel %vm312, %v892, 0
        %920 = vmatprep.subr.mxu0 0.0
        %921 = vmatpush1.xpose.msra.mxu0 %v897
        %922 = vmatprep.subr.mxu0 0.0
        %923 = vmatpush1.xpose.msra.mxu0 %v900
        %924 = vmatprep.subr.mxu0 0.0
        %925 = vmatpush1.xpose.msra.mxu0 %v903
        %926 = vmatprep.subr.mxu0 0.0
        %927 = vmatpush1.xpose.msra.mxu0 %v906
        %928 = vmatprep.subr.mxu0 0.0
        %929 = vmatpush1.xpose.msra.mxu0 %v909
        %930 = vmatprep.subr.mxu0 0.0
        %931 = vmatpush1.xpose.msra.mxu0 %v912
        %932 = vmatprep.subr.mxu0 0.0
        %933 = vmatpush1.xpose.msra.mxu0 %v915
        %934 = vmatprep.subr.mxu0 0.0
        %935 = vmatpush1.xpose.msra.mxu0 %v918
        %936 = vmatprep.subr.mxu0 0.0
        %937 = vmatpush1.xpose.msra.mxu0 0.0
        %938 = vmatprep.subr.mxu0 0.0
        %939 = vmatpush1.xpose.msra.mxu0 0.0
        %940 = vmatprep.subr.mxu0 0.0
        %941 = vmatpush1.xpose.msra.mxu0 0.0
        %942 = vmatprep.subr.mxu0 0.0
        %943 = vmatpush1.xpose.msra.mxu0 0.0
        %944 = vmatprep.subr.mxu0 0.0
        %945 = vmatpush1.xpose.msra.mxu0 0.0
        %946 = vmatprep.subr.mxu0 0.0
        %947 = vmatpush1.xpose.msra.mxu0 0.0
        %948 = vmatprep.subr.mxu0 0.0
        %949 = vmatpush1.xpose.msra.mxu0 0.0
        %950 = vmatprep.subr.mxu0 0.0
        %951 = vmatpush1.xpose.msra.mxu0 0.0
        %952 = vmatprep.subr.mxu0 0.0
        %953 = vmatpush1.xpose.msra.mxu0 0.0
        %954 = vmatprep.subr.mxu0 0.0
        %955 = vmatpush1.xpose.msra.mxu0 0.0
        %956 = vmatprep.subr.mxu0 0.0
        %957 = vmatpush1.xpose.msra.mxu0 0.0
        %958 = vmatprep.subr.mxu0 0.0
        %959 = vmatpush1.xpose.msra.mxu0 0.0
        %960 = vmatprep.subr.mxu0 0.0
        %961 = vmatpush1.xpose.msra.mxu0 0.0
        %962 = vmatprep.subr.mxu0 0.0
        %963 = vmatpush1.xpose.msra.mxu0 0.0
        %964 = vmatprep.subr.mxu0 0.0
        %965 = vmatpush1.xpose.msra.mxu0 0.0
        %966 = vmatprep.subr.mxu0 0.0
        %967 = vmatpush1.xpose.msra.mxu0 0.0
        %968 = vmatprep.subr.mxu0 0.0
        %969 = vmatpush1.xpose.msra.mxu0 0.0
        %970 = vmatprep.subr.mxu0 0.0
        %971 = vmatpush1.xpose.msra.mxu0 0.0
        %972 = vmatprep.subr.mxu0 0.0
        %973 = vmatpush1.xpose.msra.mxu0 0.0
        %974 = vmatprep.subr.mxu0 0.0
        %975 = vmatpush1.xpose.msra.mxu0 0.0
        %976 = vmatprep.subr.mxu0 0.0
        %977 = vmatpush1.xpose.msra.mxu0 0.0
        %978 = vmatprep.subr.mxu0 0.0
        %979 = vmatpush1.xpose.msra.mxu0 0.0
        %980 = vmatprep.subr.mxu0 0.0
        %981 = vmatpush1.xpose.msra.mxu0 0.0
        %982 = vmatprep.subr.mxu0 0.0
        %983 = vmatpush1.xpose.msra.mxu0 0.0
        %984 = vmatprep.mubr.f32.mxu0 0.0
        %985 = vmatmul.mubr.f32.gmra.mrb[0].mxu0 %v894
        %v986 = vpop.f32.mrb[0].mxu0
        %v987 = vadd.f32 0.0, %v986
        %v988 = vpop.f32.mrb[0].mxu0
        %989 = vdwg.mxu0
        %v990 = vld [vmem:[%s4 + $0x3] sm:$0x1]
        %v991 = vlaneseq
        %v992 = vshrl.u32 %v991, 7
        %v993 = vsub.s32 0, %v992
        %v994 = vrot.slane %v990, %v993
        %v995 = vsub.f32 %v994, %v987
        %v996 = vsel %vm416, %v995, inf
        %997 = vmin.xlane.f32.xlu0 %v996
        %v998 = vpop.xlane.xlu0 %997
        %vm999 = vcmp.le.f32.partialorder %v995, %v998
        %v1000 = vsel %vm999, 1, 0
        %v1001 = vcvt.s32.f32 %v1000
        %v1003 = vsel %vm416, %v1001, 0
        %1005 = vmatprep.subr.mxu0 0.0
        %1006 = vmatpush1.msra.mxu0 %v885
        %1007 = vmatprep.subr.mxu0 0.0
        %1008 = vmatpush1.msra.mxu0 %v886
        %1009 = vmatprep.subr.mxu0 0.0
        %1010 = vmatpush1.msra.mxu0 %v887
        %1011 = vmatprep.subr.mxu0 0.0
        %1012 = vmatpush1.msra.mxu0 %v888
        %1013 = vmatprep.subr.mxu0 0.0
        %1014 = vmatpush1.msra.mxu0 %v889
        %1015 = vmatprep.subr.mxu0 0.0
        %1016 = vmatpush1.msra.mxu0 %v890
        %1017 = vmatprep.subr.mxu0 0.0
        %1018 = vmatpush1.msra.mxu0 %v891
        %1019 = vmatprep.subr.mxu0 0.0
        %1020 = vmatpush1.msra.mxu0 %v892
        %1021 = vmatprep.subr.mxu0 0.0
        %1022 = vmatpush1.msra.mxu0 0.0
        %1023 = vmatprep.subr.mxu0 0.0
        %1024 = vmatpush1.msra.mxu0 0.0
        %1025 = vmatprep.subr.mxu0 0.0
        %1026 = vmatpush1.msra.mxu0 0.0
        %1027 = vmatprep.subr.mxu0 0.0
        %1028 = vmatpush1.msra.mxu0 0.0
        %1029 = vmatprep.subr.mxu0 0.0
        %1030 = vmatpush1.msra.mxu0 0.0
        %1031 = vmatprep.subr.mxu0 0.0
        %1032 = vmatpush1.msra.mxu0 0.0
        %1033 = vmatprep.subr.mxu0 0.0
        %1034 = vmatpush1.msra.mxu0 0.0
        %1035 = vmatprep.subr.mxu0 0.0
        %1036 = vmatpush1.msra.mxu0 0.0
        %1037 = vmatprep.subr.mxu0 0.0
        %1038 = vmatpush1.msra.mxu0 0.0
        %1039 = vmatprep.subr.mxu0 0.0
        %1040 = vmatpush1.msra.mxu0 0.0
        %1041 = vmatprep.subr.mxu0 0.0
        %1042 = vmatpush1.msra.mxu0 0.0
        %1043 = vmatprep.subr.mxu0 0.0
        %1044 = vmatpush1.msra.mxu0 0.0
        %1045 = vmatprep.subr.mxu0 0.0
        %1046 = vmatpush1.msra.mxu0 0.0
        %1047 = vmatprep.subr.mxu0 0.0
        %1048 = vmatpush1.msra.mxu0 0.0
        %1049 = vmatprep.subr.mxu0 0.0
        %1050 = vmatpush1.msra.mxu0 0.0
        %1051 = vmatprep.subr.mxu0 0.0
        %1052 = vmatpush1.msra.mxu0 0.0
        %1053 = vmatprep.subr.mxu0 0.0
        %1054 = vmatpush1.msra.mxu0 0.0
        %1055 = vmatprep.subr.mxu0 0.0
        %1056 = vmatpush1.msra.mxu0 0.0
        %1057 = vmatprep.subr.mxu0 0.0
        %1058 = vmatpush1.msra.mxu0 0.0
        %1059 = vmatprep.subr.mxu0 0.0
        %1060 = vmatpush1.msra.mxu0 0.0
        %1061 = vmatprep.subr.mxu0 0.0
        %1062 = vmatpush1.msra.mxu0 0.0
        %1063 = vmatprep.subr.mxu0 0.0
        %1064 = vmatpush1.msra.mxu0 0.0
        %1065 = vmatprep.subr.mxu0 0.0
        %1066 = vmatpush1.msra.mxu0 0.0
        %1067 = vmatprep.subr.mxu0 0.0
        %1068 = vmatpush1.msra.mxu0 0.0
        %1069 = vmatprep.mubr.f32.mxu0 0.0
        %1070 = vmatmul.mubr.f32.gmra.mrb[0].mxu0 %v1003
        %v1071 = vpop.f32.mrb[0].mxu0
        %v1072 = vadd.f32 0.0, %v1071
        %v1073 = vpop.f32.mrb[0].mxu0
        %1074 = vdwg.mxu0
        %v1075 = vadd.f32 %v883, %v1072
        %1076 = vst.msk [vmem:[%s215] sm:$0xff] %vm312, %v1075
        %s1077 = sand.u32 %s137, 1
        %s1078 = scalar_lea.sflag [#allocation3], %s1077
        %s1079 = sand.u32 %s137, 1
        %s1080 = smul.addr %s1079, 8
        %s1081 = scalar_lea.vmem [#allocation2], %s1080
        // Predicated region
        $region41: #{tpu_custom_call.1} parent=39 // pred_check
          %p1082 = pneg %p147
        $region42: #{tpu_custom_call.1} parent=39 // pred_check_branch
          %1084 = sbr.rel (%p1082) target = $region44
        $region43: #{tpu_custom_call.1} parent=39 // pred_region
          %s1086 = ssub.s32 128, 128
          %1087 = vsyncadd %s1078, %s1086
          %s1088 = smul.addr %s19, 128
          %s1089 = scalar_lea.hbm %s5, %s1088
          %s1091 = sshll.u32 %s1081, 4
          %s1092 = int_to_ptr.vmem [resolvable:$true] %s1091
          %1094 = dma.vmem_to_hbm [thread:$0]  %s1092, 128, %s1089, %s1078
        $region44: #{tpu_custom_call.1} parent=39 // pred_fallthru
          _
      $region40: #{tpu_custom_call.1} parent=5 // pred_fallthru
        _
      %p1095 = scmp.le.s32.totalorder 2, %s14
      // Predicated region
      $region45: #{tpu_custom_call.1} parent=5 // pred_check
        %p1096 = pneg %p1095
      $region46: #{tpu_custom_call.1} parent=5 // pred_check_branch
        %1098 = sbr.rel (%p1096) target = $region48
      $region47: #{tpu_custom_call.1} parent=5 // pred_region
        %s1099 = ssub.s32 %s14, 2
        // Predicated region
        $region49: #{tpu_custom_call.1} parent=47 // pred_check
          %p1100 = pneg %p153
        $region50: #{tpu_custom_call.1} parent=47 // pred_check_branch
          %1102 = sbr.rel (%p1100) target = $region52
        $region51: #{tpu_custom_call.1} parent=47 // pred_region
          %s1103 = sand.u32 %s138, 1
          %s1104 = scalar_lea.sflag [#allocation3], %s1103
          %s1105 = sand.u32 %s138, 1
          %s1106 = smul.addr %s1105, 8
          %s1107 = scalar_lea.vmem [#allocation2], %s1106
          %1108 = dma.done %s1104, 128
        $region52: #{tpu_custom_call.1} parent=47 // pred_fallthru
          _
      $region48: #{tpu_custom_call.1} parent=5 // pred_fallthru
        _
    $region6: #{tpu_custom_call.1} parent=1 // loop_footer
      %s18 = sadd.s32 1, %s14
    $region7: #{tpu_custom_call.1} parent=1 // loop_footer_branch
      %13 = sbr.rel target = $region3
    $region8: #{tpu_custom_call.1} parent=1 // loop_exit
      _
    %1109 = vsyncpa [#allocation3], 1
    %s1110 = scalar_lea.sflag [#allocation3], 1
    %1111 = vsyncpa %s1110, 1

</llo_original>
